<compile_context>
chip_gen: v7x
topology: tpu7x:2x2x1
jax: 0.10.0
libtpu: 0.0.40
codegen_flags: <defaults>
</compile_context>

<pallas_src>
import functools

import jax
import jax.numpy as jnp
from jax import lax
from jax.experimental import pallas as pl
from jax.experimental.pallas import tpu as pltpu

EPS = 1e-5


def _round_up(v, m):
    return (v + m - 1) // m * m


def _vmem_limit_bytes():
    """Generation-aware VMEM budget with headroom for compiler-internal scratch."""
    try:
        cap = int(pltpu.get_tpu_info().vmem_capacity_bytes)
    except Exception:
        cap = 64 * 1024 * 1024            # conservative fallback (v7x-sized)
    return max(int(cap * 3 // 4), 32 * 1024 * 1024)


def _im2col(x3d, *, K, L, pad, dtype):
    """(block_n, Cin, L) -> (K*Cin, block_n*L) taps in `dtype`.

    Row order is k*Cin + c, matching w2 = weight.transpose(0, 2, 1).reshape(Cout, K*Cin),
    so the K conv taps are folded into the contraction of ONE MXU matmul.
    The K-1 halo is zero-filled in VMEM (no wrapper-side jnp.pad / extra HBM traffic).
    """
    bn, cin, _ = x3d.shape
    xb = x3d.astype(dtype)
    zpad = jnp.zeros((cin, pad), dtype)
    cols = []
    for nn in range(bn):
        xp = jnp.concatenate([zpad, xb[nn], zpad], axis=1)                     # (Cin, L+2p)
        cols.append(jnp.concatenate([xp[:, k:k + L] for k in range(K)], axis=0))  # (K*Cin, L)
    return cols[0] if bn == 1 else jnp.concatenate(cols, axis=1)               # (K*Cin, bn*L)


def _stats_kernel(x_ref, w_ref, stats_ref, *, K, L, pad):
    """Pass 1: per-channel sum / sum-of-squares of conv(x) (no bias) for this core's
    batch slice.  stats_ref block is the per-core accumulator slot (1, Cout_p, 2)."""
    @pl.when(pl.program_id(1) == 0)
    def _init():
        stats_ref[...] = jnp.zeros_like(stats_ref)

    taps = _im2col(x_ref[...], K=K, L=L, pad=pad, dtype=w_ref.dtype)   # bf16 taps
    # bf16 x bf16 -> f32 accumulate on the MXU; one matmul for the whole block.
    y = jnp.dot(w_ref[...], taps, preferred_element_type=jnp.float32)  # (Cout_p, bn*L) f32
    s = jnp.sum(y, axis=1, keepdims=True)                              # (Cout_p, 1)
    q = jnp.sum(y * y, axis=1, keepdims=True)                          # (Cout_p, 1)
    stats_ref[...] += jnp.concatenate([s, q], axis=1)[None]            # (1, Cout_p, 2)


def _fwd_kernel(x_ref, w_ref, b_ref, o_ref, *, K, L, pad, pool, cout):
    """Pass 2: conv with BN-folded weights + fused bias, ReLU, MaxPool1d, store."""
    block_n = x_ref.shape[0]
    cout_p = w_ref.shape[0]
    lp = L // pool

    taps = _im2col(x_ref[...], K=K, L=L, pad=pad, dtype=w_ref.dtype)   # (K*Cin, bn*L) bf16
    y = jnp.dot(w_ref[...], taps, preferred_element_type=jnp.float32)  # (Cout_p, bn*L) f32
    y = jnp.maximum(y + b_ref[...], 0.0)                               # folded BN bias + ReLU

    for nn in range(block_n):                      # slices / reshape / store only (no matmuls)
        ys = y[:, nn * L: nn * L + lp * pool]                          # (Cout_p, lp*pool)
        pooled = jnp.max(ys.reshape(cout_p, lp, pool), axis=-1)        # MaxPool1d, floor
        o_ref[nn] = pooled[:cout]


def cnn_sequential_block(x, weight, bias, gamma, beta, *, kernel_size=5, pool=2,
                         block_n=1, compute_dtype=jnp.bfloat16):
    """x: (N, Cin, L) f32, NCL layout. Returns (N, Cout, L // pool) f32."""
    n, cin, l = x.shape
    cout = weight.shape[0]
    assert kernel_size % 2 == 1, "padding=K//2 'same' conv requires odd kernel_size"
    assert n % block_n == 0, "batch must be divisible by block_n"
    pad = kernel_size // 2
    lp = l // pool

    # Sublane-align Cout (pad weights with zero rows, gamma with 1, bias/beta with 0).
    # For realistic sizes pad to 128 (v5e) / 256 (v6e, v7x) multiples for MXU fill.
    cout_p = _round_up(cout, 8)
    pad_c = cout_p - cout

    # Fold the K taps into the contraction dim, row order k*Cin + c (matches _im2col).
    w2 = jnp.transpose(weight, (0, 2, 1)).reshape(cout, kernel_size * cin)
    w2 = jnp.pad(w2, ((0, pad_c), (0, 0)))
    bias_p = jnp.pad(bias, (0, pad_c))
    gamma_p = jnp.pad(gamma, (0, pad_c), constant_values=1.0)
    beta_p = jnp.pad(beta, (0, pad_c))

    w2_lo = w2.astype(compute_dtype)
    vmem_limit = _vmem_limit_bytes()

    nblocks = n // block_n
    ncore = 2 if nblocks % 2 == 0 else 1     # split the pass-1 reduction over v7x's 2 TCs
    steps = nblocks // ncore

    def x_map_p1(c, i):
        return (c * steps + i, 0, 0)

    # ---------------- pass 1: per-channel sum / sumsq of conv(x) (no bias) ----------------
    stats = pl.pallas_call(
        functools.partial(_stats_kernel, K=kernel_size, L=l, pad=pad),
        grid=(ncore, steps),
        in_specs=[
            pl.BlockSpec((block_n, cin, l), x_map_p1),
            pl.BlockSpec((cout_p, kernel_size * cin), lambda c, i: (0, 0)),
        ],
        out_specs=pl.BlockSpec((1, cout_p, 2), lambda c, i: (c, 0, 0)),
        out_shape=jax.ShapeDtypeStruct((ncore, cout_p, 2), jnp.float32),
        compiler_params=pltpu.CompilerParams(
            dimension_semantics=("parallel", "arbitrary"),
            vmem_limit_bytes=vmem_limit),
    )(x, w2_lo)

    # ---------------- wrapper: combine partials, fold BN into conv weights ----------------
    stats = jnp.sum(stats, axis=0)                                  # (Cout_p, 2) f32
    inv = 1.0 / float(n * l)
    mean0 = stats[:, 0] * inv                                       # mean of conv WITHOUT bias
    var = jnp.maximum(stats[:, 1] * inv - mean0 * mean0, 0.0)       # shift-invariant variance
    mean = mean0 + bias_p                                           # re-add the bias pivot
    scale = gamma_p * lax.rsqrt(var + EPS)                          # (Cout_p,)
    shift = beta_p - mean * scale
    # scale*(Wx + b) + shift == (scale*W) x + (scale*b + shift)
    w2_fused = (w2 * scale[:, None]).astype(compute_dtype)
    b_fused = (bias_p * scale + shift).reshape(cout_p, 1).astype(jnp.float32)

    # ---------------- pass 2: conv(+folded BN) + ReLU + maxpool, per batch tile ------------
    out = pl.pallas_call(
        functools.partial(_fwd_kernel, K=kernel_size, L=l, pad=pad, pool=pool, cout=cout),
        grid=(nblocks,),
        in_specs=[
            pl.BlockSpec((block_n, cin, l), lambda i: (i, 0, 0)),
            pl.BlockSpec((cout_p, kernel_size * cin), lambda i: (0, 0)),
            pl.BlockSpec((cout_p, 1), lambda i: (0, 0)),
        ],
        out_specs=pl.BlockSpec((block_n, cout, lp), lambda i: (i, 0, 0)),
        out_shape=jax.ShapeDtypeStruct((n, cout, lp), jnp.float32),
        compiler_params=pltpu.CompilerParams(
            dimension_semantics=("parallel",),          # megacore sharding of the batch axis
            vmem_limit_bytes=vmem_limit),
    )(x, w2_fused, b_fused)
    return out


def _reference(x, weight, bias, gamma, beta, *, kernel_size=5, pool=2):
    """Pure-JAX f32 reference (same semantics as the PyTorch module in train mode)."""
    pad = kernel_size // 2
    out = lax.conv_general_dilated(
        x, weight, window_strides=(1,), padding=[(pad, pad)],
        dimension_numbers=("NCH", "OIH", "NCH"))
    out = out + bias[None, :, None]
    mean = jnp.mean(out, axis=(0, 2), keepdims=True)
    var = jnp.mean((out - mean) ** 2, axis=(0, 2), keepdims=True)
    out = (out - mean) * lax.rsqrt(var + EPS)
    out = out * gamma[None, :, None] + beta[None, :, None]
    out = jnp.maximum(out, 0.0)
    n, c, l = out.shape
    lp = (l // pool) * pool
    return jnp.max(out[:, :, :lp].reshape(n, c, lp // pool, pool), axis=-1)


if __name__ == "__main__":
    # Small deterministic problem: N=2, Cin=4, Cout=8, L=16, K=5, pool=2.
    N, CIN, COUT, L, K, POOL = 2, 4, 8, 16, 5, 2

    key = jax.random.PRNGKey(0)
    kx, kw, kb = jax.random.split(key, 3)

    x = jax.random.normal(kx, (N, CIN, L), dtype=jnp.float32)

    bound = 1.0 / jnp.sqrt(jnp.float32(CIN * K))
    weight = jax.random.uniform(kw, (COUT, CIN, K), jnp.float32, -bound, bound)
    bias = jax.random.uniform(kb, (COUT,), jnp.float32, -bound, bound)
    gamma = jnp.linspace(0.5, 1.5, COUT, dtype=jnp.float32)
    beta = jnp.linspace(-0.2, 0.2, COUT, dtype=jnp.float32)

    ref = _reference(x, weight, bias, gamma, beta, kernel_size=K, pool=POOL)

    # f32 MXU path: tight check of the kernel semantics.
    out_f32 = cnn_sequential_block(x, weight, bias, gamma, beta,
                                   kernel_size=K, pool=POOL, block_n=1,
                                   compute_dtype=jnp.float32)
    out_f32 = jax.block_until_ready(out_f32)
    assert out_f32.shape == (N, COUT, L // POOL)
    assert jnp.allclose(out_f32, ref, rtol=1e-4, atol=1e-4)

    # bf16 MXU path (the fast path): loosened tolerance for bf16 operand rounding.
    out_bf16 = cnn_sequential_block(x, weight, bias, gamma, beta,
                                    kernel_size=K, pool=POOL, block_n=1,
                                    compute_dtype=jnp.bfloat16)
    out_bf16 = jax.block_until_ready(out_bf16)
    assert jnp.allclose(out_bf16, ref, rtol=3e-2, atol=3e-2)

    # bf16 path with block_n=2 (single matmul over a multi-sample tile).
    out_blk = cnn_sequential_block(x, weight, bias, gamma, beta,
                                   kernel_size=K, pool=POOL, block_n=2,
                                   compute_dtype=jnp.bfloat16)
    out_blk = jax.block_until_ready(out_blk)
    assert jnp.allclose(out_blk, ref, rtol=3e-2, atol=3e-2)

    print("KERNEL_OK")
</pallas_src>

<mosaic_0001>
module attributes {stable_mosaic.version = 11 : i64} {
  func.func @_stats_kernel(%arg0: i32, %arg1: i32, %arg2: memref<1x4x16xf32, #tpu.memory_space<vmem>>, %arg3: memref<8x20xf32, #tpu.memory_space<vmem>>, %arg4: memref<1x8x2xf32, #tpu.memory_space<vmem>>) attributes {dimension_semantics = [#tpu.dimension_semantics<parallel>, #tpu.dimension_semantics<arbitrary>], iteration_bounds = array<i64: 2, 1>, scalar_prefetch = 0 : i64, scratch_operands = 0 : i64, tpu.core_type = #tpu.core_type<tc>, window_params = [{transform_indices = @transform_0, window_bounds = array<i64: 1, 4, 16>}, {pipeline_mode = #tpu.pipeline_mode<synchronous>, transform_indices = @transform_1, window_bounds = array<i64: 8, 20>}, {transform_indices = @transform_2, window_bounds = array<i64: 1, 8, 2>}]} {
    %c0_i32 = arith.constant 0 : i32
    %0 = arith.cmpi eq, %arg1, %c0_i32 : i32
    %1 = arith.extui %0 : i1 to i32
    %c0_i32_0 = arith.constant 0 : i32
    %2 = arith.cmpi ne, %1, %c0_i32_0 : i32
    scf.if %2 {
      %cst_14 = arith.constant 0.000000e+00 : f32
      %25 = vector.broadcast %cst_14 : f32 to vector<1x8x2xf32>
      %c0_15 = arith.constant 0 : index
      %c0_16 = arith.constant 0 : index
      %c0_17 = arith.constant 0 : index
      %26 = vector.load %arg4[%c0_15, %c0_16, %c0_17] : memref<1x8x2xf32, #tpu.memory_space<vmem>>, vector<1x8x2xf32>
      tpu.vector_store %arg4[%c0_15, %c0_16, %c0_17], %25 {strides = array<i32>} : memref<1x8x2xf32, #tpu.memory_space<vmem>>, vector<1x8x2xf32>,
    } else {
    }
    %c0 = arith.constant 0 : index
    %c0_1 = arith.constant 0 : index
    %c0_2 = arith.constant 0 : index
    %3 = vector.load %arg2[%c0, %c0_1, %c0_2] : memref<1x4x16xf32, #tpu.memory_space<vmem>>, vector<1x4x16xf32>
    %cst = arith.constant 0.000000e+00 : f32
    %4 = vector.broadcast %cst : f32 to vector<4x2xf32>
    %5 = vector.shape_cast %3 : vector<1x4x16xf32> to vector<4x16xf32>
    %6 = tpu.concatenate %4, %5, %4 in 1 : vector<4x2xf32>, vector<4x16xf32>, vector<4x2xf32> -> vector<4x20xf32>
    %7 = vector.extract_strided_slice %6 {offsets = [0, 0], sizes = [4, 16], strides = [1, 1]} : vector<4x20xf32> to vector<4x16xf32>
    %8 = vector.extract_strided_slice %6 {offsets = [0, 1], sizes = [4, 16], strides = [1, 1]} : vector<4x20xf32> to vector<4x16xf32>
    %9 = vector.extract_strided_slice %6 {offsets = [0, 2], sizes = [4, 16], strides = [1, 1]} : vector<4x20xf32> to vector<4x16xf32>
    %10 = vector.extract_strided_slice %6 {offsets = [0, 3], sizes = [4, 16], strides = [1, 1]} : vector<4x20xf32> to vector<4x16xf32>
    %11 = vector.extract_strided_slice %6 {offsets = [0, 4], sizes = [4, 16], strides = [1, 1]} : vector<4x20xf32> to vector<4x16xf32>
    %12 = tpu.concatenate %7, %8, %9, %10, %11 in 0 : vector<4x16xf32>, vector<4x16xf32>, vector<4x16xf32>, vector<4x16xf32>, vector<4x16xf32> -> vector<20x16xf32>
    %c0_3 = arith.constant 0 : index
    %c0_4 = arith.constant 0 : index
    %13 = vector.load %arg3[%c0_3, %c0_4] : memref<8x20xf32, #tpu.memory_space<vmem>>, vector<8x20xf32>
    %cst_5 = arith.constant dense<0.000000e+00> : vector<8x16xf32>
    %14 = tpu.matmul %13, %12, %cst_5 {dimension_numbers = #tpu.dot_dimension_numbers<[1], [0], [0], [1], [0, 0, 1, 1], [], []>} : vector<8x20xf32>, vector<20x16xf32>, vector<8x16xf32> -> vector<8x16xf32>
    %cst_6 = arith.constant dense<0.000000e+00> : vector<8xf32>
    %15 = vector.multi_reduction <add>, %14, %cst_6 [1] : vector<8x16xf32> to vector<8xf32>
    %16 = vector.shape_cast %15 : vector<8xf32> to vector<8x1xf32>
    %17 = arith.mulf %14, %14 : vector<8x16xf32>
    %cst_7 = arith.constant dense<0.000000e+00> : vector<8xf32>
    %18 = vector.multi_reduction <add>, %17, %cst_7 [1] : vector<8x16xf32> to vector<8xf32>
    %19 = vector.shape_cast %18 : vector<8xf32> to vector<8x1xf32>
    %c0_8 = arith.constant 0 : index
    %c0_9 = arith.constant 0 : index
    %c0_10 = arith.constant 0 : index
    %20 = vector.load %arg4[%c0_8, %c0_9, %c0_10] : memref<1x8x2xf32, #tpu.memory_space<vmem>>, vector<1x8x2xf32>
    %21 = tpu.concatenate %16, %19 in 1 : vector<8x1xf32>, vector<8x1xf32> -> vector<8x2xf32>
    %22 = vector.shape_cast %21 : vector<8x2xf32> to vector<1x8x2xf32>
    %23 = arith.addf %20, %22 : vector<1x8x2xf32>
    %c0_11 = arith.constant 0 : index
    %c0_12 = arith.constant 0 : index
    %c0_13 = arith.constant 0 : index
    %24 = vector.load %arg4[%c0_11, %c0_12, %c0_13] : memref<1x8x2xf32, #tpu.memory_space<vmem>>, vector<1x8x2xf32>
    tpu.vector_store %arg4[%c0_11, %c0_12, %c0_13], %23 {strides = array<i32>} : memref<1x8x2xf32, #tpu.memory_space<vmem>>, vector<1x8x2xf32>,
    return
  }
  func.func @transform_0(%arg0: i32, %arg1: i32) -> (i32, i32, i32) {
    %c1_i32 = arith.constant 1 : i32
    %0 = arith.muli %arg0, %c1_i32 : i32
    %1 = arith.addi %0, %arg1 : i32
    %c0_i32 = arith.constant 0 : i32
    %c0_i32_0 = arith.constant 0 : i32
    %c0_i32_1 = arith.constant 0 : i32
    return %1, %c0_i32, %c0_i32_0 : i32, i32, i32
  }
  func.func @transform_1(%arg0: i32, %arg1: i32) -> (i32, i32) {
    %c0_i32 = arith.constant 0 : i32
    %c0_i32_0 = arith.constant 0 : i32
    %c0_i32_1 = arith.constant 0 : i32
    return %c0_i32, %c0_i32_0 : i32, i32
  }
  func.func @transform_2(%arg0: i32, %arg1: i32) -> (i32, i32, i32) {
    %c0_i32 = arith.constant 0 : i32
    %c0_i32_0 = arith.constant 0 : i32
    %c0_i32_1 = arith.constant 0 : i32
    return %arg0, %c0_i32, %c0_i32_0 : i32, i32, i32
  }
}

</mosaic_0001>

<llo_original>
// kernel: tpu_custom_call.1
$region0: #{tpu_custom_call.1}
  #allocation0 [shape = 'u32[]', space=smem, size = 0x4, offset = 0x4, fixed_abs, tag = 'smem constant byte address 0x4 - core index']
  #allocation1 [shape = 'u32[144,128]{1,0:T(1,128)}', space=vmem, size = 0x12000, scoped, tag = 'internal scratch']
  %s0 = inlined_call_operand.hbm [shape: f32[2,4,16], index: 0, kind: input, shape index: {}]
  %s1 = inlined_call_operand.hbm [shape: f32[8,20], index: 1, kind: input, shape index: {}]
  %s2 = inlined_call_operand.vmem [shape: f32[2,8,2], index: 2, kind: output, shape index: {}]
  %s3 = sld [smem:[#allocation0]]
  $region53: #{tpu_custom_call.1} parent=0
    _
  %s5 = ssub.s32 1, %s3
  %s6 = scalar_select 0, %s5, %s3
  $region1: #{tpu_custom_call.1} parent=0
    #allocation2 [shape = 'u8[4096]{0}', space=vmem, size = 0x1000, scoped, tag = 'input window, operand 0']
    #allocation3 [shape = 's32[2]{0}', space=sflag, size = 0x8, scoped, tag = 'scoped memory for tpu_custom_call.1']
    #allocation4 [shape = 'u8[4096]{0}', space=vmem, size = 0x1000, scoped, tag = 'input window, operand 1, single buffered']
    #allocation5 [shape = 's32[1]{0}', space=sflag, size = 0x4, scoped, tag = 'scoped memory for tpu_custom_call.1']
    %7 = vsyncpa [#allocation3], 0
    %s8 = scalar_lea.sflag [#allocation3], 1
    %9 = vsyncpa %s8, 0
    %10 = vsyncpa [#allocation5], 0
    loop: start=0, step=1, limit=4
    $region2: #{tpu_custom_call.1} parent=1 // loop_pre_header
      _
    $region3: #{tpu_custom_call.1} parent=1 // loop_header
      %s12 = sphi 0, %s16
      %p13 = scmp.ge.s32.totalorder %s12, 4
      %s19 = sphi 0, %s31
      %s20 = sphi 0, %s27
      %s21 = sphi 0, %s19
      %s22 = sphi 0, %s20
      %s23 = sphi 0, %s21
      %s24 = sphi 0, %s22
      %s36 = sphi 0, %s38
      %s39 = sphi 0, %s36
      %s40 = sphi 0, %s39
      %s56 = sphi 0, %s40
      %s60 = sphi 0, %s60
      %s62 = sphi 0, %s60
      %s63 = sphi 0, %s62
      %s77 = sphi 0, %s63
      %s83 = sphi 0, %s85
      %s86 = sphi 0, %s83
      %s87 = sphi 0, %s86
      %s103 = sphi 0, %s87
    $region4: #{tpu_custom_call.1} parent=1 // loop_header_branch
      %15 = sbr.rel (%p13) target = $region8
    $region5: #{tpu_custom_call.1} parent=1 // loop_body
      %s17 = ssub.s32 %s12, 1
      %s18 = ssub.s32 %s12, 2
      %s25 = sadd.s32 1, %s20
      %p26 = scmp.ge.s32.totalorder %s25, 1
      %s27 = scalar_select %p26, 0, %s25
      %s28 = sadd.s32 1, %s19
      %s29 = scalar_select %p26, %s28, %s19
      %p30 = scmp.ge.s32.totalorder %s29, 2
      %s31 = scalar_select %p30, 0, %s29
      %s32 = sadd.s32 %s19, %s20
      %s33 = sadd.s32 %s31, %s27
      %s34 = ssub.s32 %s32, %s33
      %p35 = scmp.eq.s32.totalorder %s34, 0
      %s37 = sadd.s32 %s36, 1
      %s38 = scalar_select %p35, %s36, %s37
      %p41 = pneg %p35
      %p42 = scmp.eq.s32.totalorder %s12, 1
      %p43 = por %p41, %p42
      %p44 = scmp.ne.s32.totalorder %s36, %s39
      %p45 = scmp.eq.s32.totalorder %s12, 0
      %p46 = por %p44, %p45
      %p47 = scmp.ne.s32.totalorder %s36, %s39
      %p48 = scmp.eq.s32.totalorder %s17, 1
      %p49 = por %p47, %p48
      %p50 = scmp.ne.s32.totalorder %s39, %s40
      %p51 = scmp.eq.s32.totalorder %s17, 0
      %p52 = por %p50, %p51
      %p53 = scmp.ne.s32.totalorder %s39, %s40
      %p54 = scmp.eq.s32.totalorder %s18, 1
      %p55 = por %p53, %p54
      %p57 = scmp.ne.s32.totalorder %s40, %s56
      %p58 = scmp.eq.s32.totalorder %s18, 0
      %p59 = por %p57, %p58
      %s61 = sadd.s32 %s60, 1
      %p64 = scmp.eq.s32.totalorder %s12, 1
      %p65 = scmp.ne.s32.totalorder %s60, %s62
      %p66 = scmp.eq.s32.totalorder %s12, 0
      %p67 = por %p65, %p66
      %p68 = scmp.ne.s32.totalorder %s60, %s62
      %p69 = scmp.eq.s32.totalorder %s17, 1
      %p70 = por %p68, %p69
      %p71 = scmp.ne.s32.totalorder %s62, %s63
      %p72 = scmp.eq.s32.totalorder %s17, 0
      %p73 = por %p71, %p72
      %p74 = scmp.ne.s32.totalorder %s62, %s63
      %p75 = scmp.eq.s32.totalorder %s18, 1
      %p76 = por %p74, %p75
      %p78 = scmp.ne.s32.totalorder %s63, %s77
      %p79 = scmp.eq.s32.totalorder %s18, 0
      %p80 = por %p78, %p79
      %s81 = ssub.s32 %s19, %s31
      %p82 = scmp.eq.s32.totalorder %s81, 0
      %s84 = sadd.s32 %s83, 1
      %s85 = scalar_select %p82, %s83, %s84
      %p88 = pneg %p82
      %p89 = scmp.eq.s32.totalorder %s12, 1
      %p90 = por %p88, %p89
      %p91 = scmp.ne.s32.totalorder %s83, %s86
      %p92 = scmp.eq.s32.totalorder %s12, 0
      %p93 = por %p91, %p92
      %p94 = scmp.ne.s32.totalorder %s83, %s86
      %p95 = scmp.eq.s32.totalorder %s17, 1
      %p96 = por %p94, %p95
      %p97 = scmp.ne.s32.totalorder %s86, %s87
      %p98 = scmp.eq.s32.totalorder %s17, 0
      %p99 = por %p97, %p98
      %p100 = scmp.ne.s32.totalorder %s86, %s87
      %p101 = scmp.eq.s32.totalorder %s18, 1
      %p102 = por %p100, %p101
      %p104 = scmp.ne.s32.totalorder %s87, %s103
      %p105 = scmp.eq.s32.totalorder %s18, 0
      %p106 = por %p104, %p105
      %p107 = scmp.le.s32.totalorder 1, %s12
      %p108 = scmp.lt.s32.totalorder %s12, 3
      %p109 = pnand %p107, %p108
      %p110 = pneg %p109
      // Predicated region
      $region9: #{tpu_custom_call.1} parent=5 // pred_check
        _
      $region10: #{tpu_custom_call.1} parent=5 // pred_check_branch
        %112 = sbr.rel (%p109) target = $region12
      $region11: #{tpu_custom_call.1} parent=5 // pred_region
        %s113 = ssub.s32 %s12, 1
        // Predicated region
        $region13: #{tpu_custom_call.1} parent=11 // pred_check
          %p114 = pneg %p73
        $region14: #{tpu_custom_call.1} parent=11 // pred_check_branch
          %116 = sbr.rel (%p114) target = $region16
        $region15: #{tpu_custom_call.1} parent=11 // pred_region
          %s118 = ssub.s32 128, 128
          %119 = vsyncadd [#allocation5], %s118
          %s121 = sshll.u32 [#allocation4], 4
          %s122 = int_to_ptr.vmem [resolvable:$true] %s121
          %124 = dma.hbm_to_vmem [thread:$0]  %s1, 128, %s122, [#allocation5]
        $region16: #{tpu_custom_call.1} parent=11 // pred_fallthru
          _
      $region12: #{tpu_custom_call.1} parent=5 // pred_fallthru
        _
      %p125 = scmp.lt.s32.totalorder %s12, 2
      // Predicated region
      $region17: #{tpu_custom_call.1} parent=5 // pred_check
        %p126 = pneg %p125
      $region18: #{tpu_custom_call.1} parent=5 // pred_check_branch
        %128 = sbr.rel (%p126) target = $region20
      $region19: #{tpu_custom_call.1} parent=5 // pred_region
        // Predicated region
        $region21: #{tpu_custom_call.1} parent=19 // pred_check
          %p129 = pneg %p46
        $region22: #{tpu_custom_call.1} parent=19 // pred_check_branch
          %131 = sbr.rel (%p129) target = $region24
        $region23: #{tpu_custom_call.1} parent=19 // pred_region
          %s132 = sand.u32 %s36, 1
          %s133 = scalar_lea.sflag [#allocation3], %s132
          %s134 = sand.u32 %s36, 1
          %s135 = smul.addr %s134, 4
          %s136 = scalar_lea.vmem [#allocation2], %s135
          %s137 = sadd.s32 %s19, %s20
          %s139 = ssub.s32 64, 64
          %140 = vsyncadd %s133, %s139
          %s141 = smul.addr %s137, 64
          %s142 = scalar_lea.hbm %s0, %s141
          %s144 = sshll.u32 %s136, 4
          %s145 = int_to_ptr.vmem [resolvable:$true] %s144
          %147 = dma.hbm_to_vmem [thread:$0]  %s142, 64, %s145, %s133
        $region24: #{tpu_custom_call.1} parent=19 // pred_fallthru
          _
      $region20: #{tpu_custom_call.1} parent=5 // pred_fallthru
        _
      %p148 = scmp.le.s32.totalorder 1, %s12
      %p149 = scmp.lt.s32.totalorder %s12, 3
      %p150 = pnand %p148, %p149
      %p151 = pneg %p150
      // Predicated region
      $region25: #{tpu_custom_call.1} parent=5 // pred_check
        _
      $region26: #{tpu_custom_call.1} parent=5 // pred_check_branch
        %153 = sbr.rel (%p150) target = $region28
      $region27: #{tpu_custom_call.1} parent=5 // pred_region
        %s154 = ssub.s32 %s12, 1
        %s155 = sand.u32 %s39, 1
        %s156 = scalar_lea.sflag [#allocation3], %s155
        %s157 = sand.u32 %s39, 1
        %s158 = smul.addr %s157, 4
        %s159 = scalar_lea.vmem [#allocation2], %s158
        // Predicated region
        $region29: #{tpu_custom_call.1} parent=27 // pred_check
          %p160 = pneg %p52
        $region30: #{tpu_custom_call.1} parent=27 // pred_check_branch
          %162 = sbr.rel (%p160) target = $region32
        $region31: #{tpu_custom_call.1} parent=27 // pred_region
          %163 = dma.done %s156, 64
        $region32: #{tpu_custom_call.1} parent=27 // pred_fallthru
          _
        // Predicated region
        $region33: #{tpu_custom_call.1} parent=27 // pred_check
          %p164 = pneg %p73
        $region34: #{tpu_custom_call.1} parent=27 // pred_check_branch
          %166 = sbr.rel (%p164) target = $region36
        $region35: #{tpu_custom_call.1} parent=27 // pred_region
          %167 = dma.done [#allocation5], 128
        $region36: #{tpu_custom_call.1} parent=27 // pred_fallthru
          _
        %s168 = sand.u32 %s39, 1
        %s169 = scalar_lea.sflag [#allocation3], %s168
        %s170 = sand.u32 %s39, 1
        %s171 = smul.addr %s170, 4
        %s172 = scalar_lea.vmem [#allocation2], %s171
        %p173 = pneg %p52
        %p174 = pneg %p49
        %p175 = pneg %p73
        %p176 = pneg %p70
        %p177 = pneg %p99
        %p178 = pneg %p96
        %p179 = scmp.lt.s32.totalorder %s21, 1
        %s180 = scalar_select %p179, %s21, 1
        %s181 = smul.addr %s180, 8
        %s182 = scalar_lea.vmem %s2, %s181
        %s183 = sadd.s32 %s21, %s22
        %p184 = scmp.lt.s32.totalorder %s21, 1
        %s185 = scalar_select %p184, %s21, 1
        %s186 = smul.addr %s185, 8
        %s187 = scalar_lea.vmem %s2, %s186
        %p188 = scmp.eq.s32.totalorder %s22, 0
        // Predicated region
        $region37: #{tpu_custom_call.1} parent=27 // pred_check
          %p189 = pneg %p188
        $region38: #{tpu_custom_call.1} parent=27 // pred_check_branch
          %191 = sbr.rel (%p189) target = $region40
        $region39: #{tpu_custom_call.1} parent=27 // pred_region
          %vm192 = vcmask 15360
          %193 = vst.msk [vmem:[%s187] sm:$0xff] %vm192, 0.0
        $region40: #{tpu_custom_call.1} parent=27 // pred_fallthru
          _
        %v194 = vld [vmem:[%s159] sm:$0xf]
        %196 = vrot.lane.b32.xlu0 %v194, 2
        %v197 = vpop.permute.xlu0 %196
        %vm199 = vcmask 15360
        %v200 = vsel %vm199, 0.0, %v197
        %vm201 = vcmask 146432
        %v202 = vsel %vm201, %v200, 0.0
        %v204 = vrot.slane %v202, 4
        %205 = vrot.lane.b32.xlu0 %v204, 127
        %v206 = vpop.permute.xlu0 %205
        %208 = vrot.lane.b32.xlu0 %v202, 126
        %v209 = vpop.permute.xlu0 %208
        %211 = vrot.lane.b32.xlu0 %v204, 125
        %v212 = vpop.permute.xlu0 %211
        %214 = vrot.lane.b32.xlu0 %v202, 124
        %v215 = vpop.permute.xlu0 %214
        %vm216 = vcmask 1043456
        %v217 = vsel %vm216, %v202, %v206
        %v218 = vsel %vm216, %v209, %v212
        %v219 = vld [vmem:[#allocation4] sm:$0xff]
        %vm220 = vcmask 162816
        %v222 = vsel %vm220, %v219, 0
        %v224 = vsel %vm216, %v215, 0
        %226 = vmatprep.subr.mxu0 0.0
        %227 = vmatpush1.msra.mxu0 %v217
        %228 = vmatprep.subr.mxu0 0.0
        %229 = vmatpush1.msra.mxu0 %v218
        %230 = vmatprep.subr.mxu0 0.0
        %231 = vmatpush1.msra.mxu0 %v224
        %232 = vmatprep.subr.mxu0 0.0
        %233 = vmatpush1.msra.mxu0 0.0
        %234 = vmatprep.subr.mxu0 0.0
        %235 = vmatpush1.msra.mxu0 0.0
        %236 = vmatprep.subr.mxu0 0.0
        %237 = vmatpush1.msra.mxu0 0.0
        %238 = vmatprep.subr.mxu0 0.0
        %239 = vmatpush1.msra.mxu0 0.0
        %240 = vmatprep.subr.mxu0 0.0
        %241 = vmatpush1.msra.mxu0 0.0
        %242 = vmatprep.subr.mxu0 0.0
        %243 = vmatpush1.msra.mxu0 0.0
        %244 = vmatprep.subr.mxu0 0.0
        %245 = vmatpush1.msra.mxu0 0.0
        %246 = vmatprep.subr.mxu0 0.0
        %247 = vmatpush1.msra.mxu0 0.0
        %248 = vmatprep.subr.mxu0 0.0
        %249 = vmatpush1.msra.mxu0 0.0
        %250 = vmatprep.subr.mxu0 0.0
        %251 = vmatpush1.msra.mxu0 0.0
        %252 = vmatprep.subr.mxu0 0.0
        %253 = vmatpush1.msra.mxu0 0.0
        %254 = vmatprep.subr.mxu0 0.0
        %255 = vmatpush1.msra.mxu0 0.0
        %256 = vmatprep.subr.mxu0 0.0
        %257 = vmatpush1.msra.mxu0 0.0
        %258 = vmatprep.subr.mxu0 0.0
        %259 = vmatpush1.msra.mxu0 0.0
        %260 = vmatprep.subr.mxu0 0.0
        %261 = vmatpush1.msra.mxu0 0.0
        %262 = vmatprep.subr.mxu0 0.0
        %263 = vmatpush1.msra.mxu0 0.0
        %264 = vmatprep.subr.mxu0 0.0
        %265 = vmatpush1.msra.mxu0 0.0
        %266 = vmatprep.subr.mxu0 0.0
        %267 = vmatpush1.msra.mxu0 0.0
        %268 = vmatprep.subr.mxu0 0.0
        %269 = vmatpush1.msra.mxu0 0.0
        %270 = vmatprep.subr.mxu0 0.0
        %271 = vmatpush1.msra.mxu0 0.0
        %272 = vmatprep.subr.mxu0 0.0
        %273 = vmatpush1.msra.mxu0 0.0
        %274 = vmatprep.subr.mxu0 0.0
        %275 = vmatpush1.msra.mxu0 0.0
        %276 = vmatprep.subr.mxu0 0.0
        %277 = vmatpush1.msra.mxu0 0.0
        %278 = vmatprep.subr.mxu0 0.0
        %279 = vmatpush1.msra.mxu0 0.0
        %280 = vmatprep.subr.mxu0 0.0
        %281 = vmatpush1.msra.mxu0 0.0
        %282 = vmatprep.subr.mxu0 0.0
        %283 = vmatpush1.msra.mxu0 0.0
        %284 = vmatprep.subr.mxu0 0.0
        %285 = vmatpush1.msra.mxu0 0.0
        %286 = vmatprep.subr.mxu0 0.0
        %287 = vmatpush1.msra.mxu0 0.0
        %288 = vmatprep.subr.mxu0 0.0
        %289 = vmatpush1.msra.mxu0 0.0
        %290 = vmatprep.mubr.f32.mxu0 0.0
        %291 = vmatmul.mubr.f32.gmra.mrb[0].mxu0 %v222
        %v292 = vpop.f32.mrb[0].mxu0
        %v293 = vadd.f32 0.0, %v292
        %v294 = vpop.f32.mrb[0].mxu0
        %295 = vdwg.mxu0
        %vm296 = vcmask 130048
        %v297 = vsel %vm296, %v293, 0.0
        %298 = vadd.xlane.f32.xlu0 %v297
        %v299 = vpop.xlane.xlu0 %298
        %v300 = vmul.f32 %v293, %v293
        %v301 = vsel %vm296, %v300, 0.0
        %302 = vadd.xlane.f32.xlu0 %v301
        %v303 = vpop.xlane.xlu0 %302
        %v304 = vld [vmem:[%s187] sm:$0xff]
        %vm305 = vcmask 7168
        %v306 = vsel %vm305, %v299, %v303
        %v307 = vadd.f32 %v304, %v306
        %308 = vst.msk [vmem:[%s187] sm:$0xff] %vm199, %v307
        %p309 = scmp.lt.s32.totalorder %s21, 1
        %s310 = scalar_select %p309, %s21, 1
        %s311 = smul.addr %s310, 8
        %s312 = scalar_lea.vmem %s2, %s311
        // Predicated region
        $region41: #{tpu_custom_call.1} parent=27 // pred_check
          %p313 = pneg %p96
        $region42: #{tpu_custom_call.1} parent=27 // pred_check_branch
          %315 = sbr.rel (%p313) target = $region44
        $region43: #{tpu_custom_call.1} parent=27 // pred_region
          _
        $region44: #{tpu_custom_call.1} parent=27 // pred_fallthru
          _
      $region28: #{tpu_custom_call.1} parent=5 // pred_fallthru
        _
      %p316 = scmp.le.s32.totalorder 2, %s12
      // Predicated region
      $region45: #{tpu_custom_call.1} parent=5 // pred_check
        %p317 = pneg %p316
      $region46: #{tpu_custom_call.1} parent=5 // pred_check_branch
        %319 = sbr.rel (%p317) target = $region48
      $region47: #{tpu_custom_call.1} parent=5 // pred_region
        %s320 = ssub.s32 %s12, 2
        // Predicated region
        $region49: #{tpu_custom_call.1} parent=47 // pred_check
          %p321 = pneg %p102
        $region50: #{tpu_custom_call.1} parent=47 // pred_check_branch
          %323 = sbr.rel (%p321) target = $region52
        $region51: #{tpu_custom_call.1} parent=47 // pred_region
          %p324 = scmp.lt.s32.totalorder %s23, 1
          %s325 = scalar_select %p324, %s23, 1
          %s326 = smul.addr %s325, 8
          %s327 = scalar_lea.vmem %s2, %s326
        $region52: #{tpu_custom_call.1} parent=47 // pred_fallthru
          _
      $region48: #{tpu_custom_call.1} parent=5 // pred_fallthru
        _
    $region6: #{tpu_custom_call.1} parent=1 // loop_footer
      %s16 = sadd.s32 1, %s12
    $region7: #{tpu_custom_call.1} parent=1 // loop_footer_branch
      %11 = sbr.rel target = $region3
    $region8: #{tpu_custom_call.1} parent=1 // loop_exit
      _
    %328 = vsyncpa [#allocation3], 1
    %s329 = scalar_lea.sflag [#allocation3], 1
    %330 = vsyncpa %s329, 1
    %331 = vsyncpa [#allocation5], 1

</llo_original>
